<compile_context>
chip_gen: v6e
topology: v6e:2x2x1
jax: 0.10.0
libtpu: 0.0.40
codegen_flags: <defaults>
</compile_context>

<pallas_src>
import math
import functools

import jax
import jax.numpy as jnp
from jax.experimental import pallas as pl
from jax.experimental.pallas import tpu as pltpu


def _pick_tile(dim, target, align=1):
    """Largest divisor of `dim` <= target, preferring multiples of `align`."""
    if dim <= target:
        return dim
    best = 1
    best_aligned = 0
    for t in range(target, 0, -1):
        if dim % t == 0:
            if best == 1:
                best = t
            if align > 1 and t % align == 0:
                best_aligned = t
                break
            if align <= 1:
                break
    return best_aligned if best_aligned else best
    # TODO(synk): for ragged dims with no aligned divisor, pad + mask instead.


def _vmem_limit(bytes_needed):
    # Derived from actual buffer bytes + headroom; capped at v7x's 64 MiB/TC.
    return int(min(64 * 2**20, max(int(bytes_needed) + 12 * 2**20, 16 * 2**20)))


# --------------------------------------------------------------------------
# Kernel 1: q/k/v projection, head-major output  (M, K) x (K, nH*D) -> (nH, M, D)
# --------------------------------------------------------------------------
def _qkv_proj_kernel(x_ref, w_ref, o_ref, acc_ref):
    k_step = pl.program_id(2)

    @pl.when(k_step == 0)
    def _init():
        acc_ref[...] = jnp.zeros(acc_ref.shape, dtype=acc_ref.dtype)

    acc_ref[...] += jnp.dot(
        x_ref[...], w_ref[...], preferred_element_type=jnp.float32
    )

    @pl.when(k_step == pl.num_programs(2) - 1)
    def _store():
        hpb, _, D = o_ref.shape
        acc = acc_ref[...]
        for h in range(hpb):            # 128-aligned lane slices -> vreg picks
            o_ref[h] = acc[:, h * D:(h + 1) * D].astype(o_ref.dtype)


def qkv_proj(x, w_t, n_heads, head_dim, *, tm_target=1024, tk_target=512,
             head_block_width=512):
    """x: (M, K), w_t: (K, n_heads*head_dim) = W.T  ->  (n_heads, M, head_dim)."""
    M, K = x.shape
    D = head_dim
    N = n_heads * D
    assert w_t.shape == (K, N)
    x = x.astype(w_t.dtype)
    isz = w_t.dtype.itemsize

    hpb = max(1, min(n_heads, max(1, head_block_width // D)))
    while n_heads % hpb:
        hpb -= 1
    if (hpb * D) % 128 and hpb != n_heads:
        hpb = n_heads                   # keep the w/out lane width 128-aligned

    tm = _pick_tile(M, tm_target, 8)
    tk = _pick_tile(K, tk_target, 128)
    grid = (M // tm, n_heads // hpb, K // tk)

    vmem = (2 * tm * tk * isz + 2 * tk * hpb * D * isz
            + 2 * hpb * tm * D * isz + tm * hpb * D * 4)

    return pl.pallas_call(
        _qkv_proj_kernel,
        out_shape=jax.ShapeDtypeStruct((n_heads, M, D), x.dtype),
        grid_spec=pltpu.PrefetchScalarGridSpec(
            num_scalar_prefetch=0,
            grid=grid,
            in_specs=[
                pl.BlockSpec((tm, tk), lambda i, h, k: (i, k)),
                pl.BlockSpec((tk, hpb * D), lambda i, h, k: (k, h)),
            ],
            out_specs=pl.BlockSpec((hpb, tm, D), lambda i, h, k: (h, i, 0)),
            scratch_shapes=[pltpu.VMEM((tm, hpb * D), jnp.float32)],
        ),
        compiler_params=pltpu.CompilerParams(
            dimension_semantics=("parallel", "parallel", "arbitrary"),
            vmem_limit_bytes=_vmem_limit(vmem),
        ),
        cost_estimate=pl.CostEstimate(
            flops=2 * M * N * K,
            transcendentals=0,
            bytes_accessed=(M * K * (n_heads // hpb)
                            + K * N * (M // tm) + M * N) * isz,
        ),
    )(x, w_t)


# --------------------------------------------------------------------------
# Kernel 2: output projection, head-major input  (nH, M, D) x (nH*D, N) -> (M, N)
# --------------------------------------------------------------------------
def _out_proj_kernel(x_ref, w_ref, o_ref, acc_ref):
    k_step = pl.program_id(2)

    @pl.when(k_step == 0)
    def _init():
        acc_ref[...] = jnp.zeros(acc_ref.shape, dtype=acc_ref.dtype)

    hpk, _, D = x_ref.shape
    part = jnp.dot(x_ref[0], w_ref[:D, :], preferred_element_type=jnp.float32)
    for h in range(1, hpk):
        part = part + jnp.dot(x_ref[h], w_ref[h * D:(h + 1) * D, :],
                              preferred_element_type=jnp.float32)
    acc_ref[...] += part

    @pl.when(k_step == pl.num_programs(2) - 1)
    def _store():
        o_ref[...] = acc_ref[...].astype(o_ref.dtype)


def out_proj(x_hm, w_t, *, tm_target=1024, tn_target=512, heads_per_step=4):
    """x_hm: (nH, M, D) head-major, w_t: (nH*D, N) = W.T  ->  (M, N)."""
    nH, M, D = x_hm.shape
    K, N = w_t.shape
    assert K == nH * D
    x_hm = x_hm.astype(w_t.dtype)
    isz = w_t.dtype.itemsize

    hpk = max(1, min(nH, heads_per_step))
    while nH % hpk:
        hpk -= 1

    tm = _pick_tile(M, tm_target, 8)
    tn = _pick_tile(N, tn_target, 128)
    grid = (M // tm, N // tn, nH // hpk)

    vmem = (2 * hpk * tm * D * isz + 2 * hpk * D * tn * isz
            + 2 * tm * tn * isz + tm * tn * 4)

    return pl.pallas_call(
        _out_proj_kernel,
        out_shape=jax.ShapeDtypeStruct((M, N), x_hm.dtype),
        grid_spec=pltpu.PrefetchScalarGridSpec(
            num_scalar_prefetch=0,
            grid=grid,
            in_specs=[
                pl.BlockSpec((hpk, tm, D), lambda i, j, k: (k, i, 0)),
                pl.BlockSpec((hpk * D, tn), lambda i, j, k: (k, j)),
            ],
            out_specs=pl.BlockSpec((tm, tn), lambda i, j, k: (i, j)),
            scratch_shapes=[pltpu.VMEM((tm, tn), jnp.float32)],
        ),
        compiler_params=pltpu.CompilerParams(
            dimension_semantics=("parallel", "parallel", "arbitrary"),
            vmem_limit_bytes=_vmem_limit(vmem),
        ),
        cost_estimate=pl.CostEstimate(
            flops=2 * M * N * K,
            transcendentals=0,
            bytes_accessed=(M * K * (N // tn) + K * N * (M // tm) + M * N) * isz,
        ),
    )(x_hm, w_t)


# --------------------------------------------------------------------------
# Kernel 3: grouped flash attention (GQA), head-major Q/K/V/out.
# Grid = (B, nKV, S/tq, S/tk_blk); when tk_blk == S the K/V block index is
# constant across the qi axis so the pipeline keeps K/V resident in VMEM.
# --------------------------------------------------------------------------
def _flash_gqa_kernel(q_ref, k_ref, v_ref, o_ref,
                      q_sc, m_sc, l_sc, acc_sc, *, scale, tk_inner):
    ki = pl.program_id(3)
    G, _, tq, D = q_ref.shape
    tk_blk = k_ref.shape[2]
    n_inner = tk_blk // tk_inner

    @pl.when(ki == 0)
    def _init():
        # Stack the G query heads of this group along rows (sublane copies only,
        # no lane relayout) with the 1/sqrt(D) scale folded in.
        for g in range(G):
            q_sc[g * tq:(g + 1) * tq, :] = (q_ref[g, 0] * scale).astype(q_sc.dtype)
        m_sc[...] = jnp.full(m_sc.shape, -jnp.inf, dtype=jnp.float32)
        l_sc[...] = jnp.zeros(l_sc.shape, dtype=jnp.float32)
        acc_sc[...] = jnp.zeros(acc_sc.shape, dtype=jnp.float32)

    def process(start):
        k = k_ref[0, 0, pl.ds(start, tk_inner), :]        # (tk_inner, D)
        v = v_ref[0, 0, pl.ds(start, tk_inner), :]
        # Scores for all G heads at once: (G*tq, D) x (tk_inner, D)^T, f32 acc.
        s = jax.lax.dot_general(q_sc[...], k, (((1,), (1,)), ((), ())),
                                preferred_element_type=jnp.float32)
        m_prev = m_sc[...]
        m_new = jnp.maximum(m_prev, jnp.max(s, axis=-1, keepdims=True))
        alpha = jnp.exp(m_prev - m_new)
        # exp in the operand dtype (bf16 EUP path on v6e/v7x); stats stay f32.
        p = jnp.exp((s - m_new).astype(v.dtype))
        l_sc[...] = alpha * l_sc[...] + jnp.sum(
            p, axis=-1, keepdims=True, dtype=jnp.float32)
        acc_sc[...] = alpha * acc_sc[...] + jnp.dot(
            p, v, preferred_element_type=jnp.float32)
        m_sc[...] = m_new

    if n_inner == 1:
        process(0)
    else:
        @pl.loop(0, n_inner)
        def _body(j):
            process(pl.multiple_of(j * tk_inner, tk_inner))

    @pl.when(ki == pl.num_programs(3) - 1)
    def _finalize():
        out = acc_sc[...] * pl.reciprocal(l_sc[...], approx=True)   # (G*tq, D)
        for g in range(G):
            o_ref[g, 0] = out[g * tq:(g + 1) * tq, :].astype(o_ref.dtype)


def flash_gqa(q_hm, k_hm, v_hm, *, tq_target=None, tk_inner_target=512,
              kv_rows_max=None, kv_budget_bytes=48 * 2**20):
    """q_hm: (nH, B, S, D); k_hm/v_hm: (nKV, B, S, D)  ->  (nH, B, S, D)."""
    nH, B, S, D = q_hm.shape
    nKV = k_hm.shape[0]
    assert k_hm.shape == v_hm.shape == (nKV, B, S, D)
    G = nH // nKV
    assert G * nKV == nH
    isz = q_hm.dtype.itemsize
    scale = 1.0 / math.sqrt(D)

    if tq_target is None:
        tq_target = min(512, max(128, 1024 // max(G, 1)))   # keep G*tq ~ 1024
    tq = _pick_tile(S, tq_target, 8)
    tk_inner = _pick_tile(S, tk_inner_target, 8)

    # Per-step VMEM excluding K/V (double-buffered Q/out blocks, scratch, temps).
    fixed = (4 * G * tq * D * isz          # q in + out, double-buffered
             + G * tq * D * isz            # q_sc
             + G * tq * D * 4              # f32 accumulator
             + 4 * G * tq * tk_inner * 4   # score / prob temporaries (estimate)
             + 4 * G * tq * 8)             # m, l
    # Grow the K/V DMA block up to the whole sequence within the budget so K/V
    # is fetched once per (batch, kv-head) instead of once per Q block.
    max_rows = max(tk_inner, (kv_budget_bytes - fixed) // (4 * D * isz))
    if kv_rows_max is not None:
        max_rows = min(max_rows, kv_rows_max)
    n_chunks = S // tk_inner
    c = 1
    for d in range(n_chunks, 0, -1):
        if n_chunks % d == 0 and d * tk_inner <= max_rows:
            c = d
            break
    tk_blk = c * tk_inner

    grid = (B, nKV, S // tq, S // tk_blk)
    kv_reread = (S // tq) if tk_blk < S else 1
    vmem = fixed + 4 * tk_blk * D * isz

    kernel = functools.partial(_flash_gqa_kernel, scale=scale, tk_inner=tk_inner)
    return pl.pallas_call(
        kernel,
        out_shape=jax.ShapeDtypeStruct((nH, B, S, D), q_hm.dtype),
        grid_spec=pltpu.PrefetchScalarGridSpec(
            num_scalar_prefetch=0,
            grid=grid,
            in_specs=[
                pl.BlockSpec((G, 1, tq, D), lambda b, g, qi, ki: (g, b, qi, 0)),
                pl.BlockSpec((1, 1, tk_blk, D), lambda b, g, qi, ki: (g, b, ki, 0)),
                pl.BlockSpec((1, 1, tk_blk, D), lambda b, g, qi, ki: (g, b, ki, 0)),
            ],
            out_specs=pl.BlockSpec((G, 1, tq, D),
                                   lambda b, g, qi, ki: (g, b, qi, 0)),
            scratch_shapes=[
                pltpu.VMEM((G * tq, D), q_hm.dtype),     # stacked, pre-scaled Q
                pltpu.VMEM((G * tq, 1), jnp.float32),    # running max m
                pltpu.VMEM((G * tq, 1), jnp.float32),    # running sum l
                pltpu.VMEM((G * tq, D), jnp.float32),    # output accumulator
            ],
        ),
        compiler_params=pltpu.CompilerParams(
            dimension_semantics=("parallel", "parallel", "parallel", "arbitrary"),
            vmem_limit_bytes=_vmem_limit(vmem),
        ),
        cost_estimate=pl.CostEstimate(
            flops=4 * B * nH * S * S * D,
            transcendentals=B * nH * S * S,
            bytes_accessed=(2 * nH * B * S * D
                            + 2 * nKV * B * S * D * kv_reread) * isz,
        ),
    )(q_hm, k_hm, v_hm)
    # TODO(synk): no causal/padding mask in the spec; add inside process() if needed.


# --------------------------------------------------------------------------
# Module-equivalent wrapper
# --------------------------------------------------------------------------
class GQAAttentionPallas:
    def __init__(self, hidden_size, num_heads, num_key_value_heads, key,
                 dtype=jnp.float32, attn_params=None):
        self.hidden_size = hidden_size
        self.num_heads = num_heads
        self.head_dim = hidden_size // num_heads
        self.num_key_value_heads = num_key_value_heads
        self.num_key_value_groups = num_heads // num_key_value_heads
        self.dtype = dtype
        self.attn_params = dict(attn_params or {})

        kq, kk, kv, ko = jax.random.split(key, 4)
        bound = 1.0 / math.sqrt(hidden_size)

        def init(k, out_f, in_f):
            # nn.Linear default init: U(-1/sqrt(in), 1/sqrt(in)); stored as W.T
            w = jax.random.uniform(
                k, (out_f, in_f), jnp.float32, minval=-bound, maxval=bound)
            return w.T.astype(dtype)  # (in_f, out_f)

        self.wq_t = init(kq, num_heads * self.head_dim, hidden_size)
        self.wk_t = init(kk, num_key_value_heads * self.head_dim, hidden_size)
        self.wv_t = init(kv, num_key_value_heads * self.head_dim, hidden_size)
        self.wo_t = init(ko, hidden_size, hidden_size)

    def __call__(self, hidden_states):
        B, S, H = hidden_states.shape
        nH, nKV, D = self.num_heads, self.num_key_value_heads, self.head_dim
        x2d = hidden_states.reshape(B * S, H).astype(self.dtype)

        # Head-major projections; all reshapes below only split/merge leading
        # dims (contiguous) — no XLA transposes anywhere in the forward pass.
        q = qkv_proj(x2d, self.wq_t, nH, D).reshape(nH, B, S, D)
        k = qkv_proj(x2d, self.wk_t, nKV, D).reshape(nKV, B, S, D)
        v = qkv_proj(x2d, self.wv_t, nKV, D).reshape(nKV, B, S, D)

        attn = flash_gqa(q, k, v, **self.attn_params)     # (nH, B, S, D)

        out = out_proj(attn.reshape(nH, B * S, D), self.wo_t)
        return (out.reshape(B, S, self.hidden_size), None)


# --------------------------------------------------------------------------
# Pure-JAX reference (f32) for sanity checking
# --------------------------------------------------------------------------
def reference_forward(mod, x):
    B, S, H = x.shape
    xf = x.astype(jnp.float32)
    wq = mod.wq_t.astype(jnp.float32)
    wk = mod.wk_t.astype(jnp.float32)
    wv = mod.wv_t.astype(jnp.float32)
    wo = mod.wo_t.astype(jnp.float32)
    q = xf @ wq
    k = xf @ wk
    v = xf @ wv
    q = q.reshape(B, S, mod.num_heads, mod.head_dim).transpose(0, 2, 1, 3)
    k = k.reshape(B, S, mod.num_key_value_heads, mod.head_dim).transpose(0, 2, 1, 3)
    v = v.reshape(B, S, mod.num_key_value_heads, mod.head_dim).transpose(0, 2, 1, 3)
    k = jnp.repeat(k, mod.num_key_value_groups, axis=1)
    v = jnp.repeat(v, mod.num_key_value_groups, axis=1)
    s = jnp.einsum("bhqd,bhkd->bhqk", q, k) / math.sqrt(mod.head_dim)
    p = jax.nn.softmax(s, axis=-1)
    o = jnp.einsum("bhqk,bhkd->bhqd", p, v)
    o = o.transpose(0, 2, 1, 3).reshape(B, S, mod.hidden_size)
    return o @ wo


if __name__ == "__main__":
    key = jax.random.PRNGKey(0)
    k_param, k_x, k_x2 = jax.random.split(key, 3)

    # Small, lane-friendly shapes implied by the module (head_dim=128 so every
    # last dim is a 128-multiple): hidden=512, nH=4, nKV=2.
    B, S = 2, 8
    num_heads, num_kv_heads, head_dim = 4, 2, 128
    H = num_heads * head_dim  # 512

    x = jax.random.normal(k_x, (B, S, H), jnp.float32)

    # --- float32 path (tolerance accounts for approx EUP reciprocal) ---
    mod32 = GQAAttentionPallas(H, num_heads, num_kv_heads, k_param,
                               dtype=jnp.float32)
    out32, _ = mod32(x)
    out32 = jax.block_until_ready(out32)
    ref32 = reference_forward(mod32, x)
    assert out32.shape == (B, S, H)
    err32 = float(jnp.max(jnp.abs(out32 - ref32)))
    assert err32 < 2e-2, f"f32 mismatch vs reference: max abs err = {err32}"

    # --- bf16 path (MXU-native operands, f32 stats, bf16 EUP exp) ---
    mod16 = GQAAttentionPallas(H, num_heads, num_kv_heads, k_param,
                               dtype=jnp.bfloat16)
    out16, _ = mod16(x.astype(jnp.bfloat16))
    out16 = jax.block_until_ready(out16)
    ref16 = reference_forward(mod16, x)
    assert out16.shape == (B, S, H)
    err16 = float(jnp.max(jnp.abs(out16.astype(jnp.float32) - ref16)))
    assert err16 < 2e-1, f"bf16 mismatch vs reference: max abs err = {err16}"

    # --- longer sequence, forcing the streamed/multi-chunk paths
    #     (ki grid axis > 1 and the inner pl.loop over K/V chunks) ---
    B2, S2 = 1, 256
    x2 = jax.random.normal(k_x2, (B2, S2, H), jnp.float32)
    mod_s = GQAAttentionPallas(
        H, num_heads, num_kv_heads, k_param, dtype=jnp.float32,
        attn_params=dict(tq_target=64, tk_inner_target=64, kv_rows_max=128))
    out_s, _ = mod_s(x2)
    out_s = jax.block_until_ready(out_s)
    ref_s = reference_forward(mod_s, x2)
    err_s = float(jnp.max(jnp.abs(out_s - ref_s)))
    assert err_s < 2e-2, f"streamed-path mismatch vs reference: max abs err = {err_s}"

    print("KERNEL_OK")
</pallas_src>

<mosaic_0001>
module attributes {stable_mosaic.version = 11 : i64} {
  func.func @_qkv_proj_kernel(%arg0: i32, %arg1: i32, %arg2: i32, %arg3: memref<16x512xf32, #tpu.memory_space<vmem>>, %arg4: memref<512x512xf32, #tpu.memory_space<vmem>>, %arg5: memref<4x16x128xf32, #tpu.memory_space<vmem>>, %arg6: memref<16x512xf32, #tpu.memory_space<vmem>>) attributes {dimension_semantics = [#tpu.dimension_semantics<parallel>, #tpu.dimension_semantics<parallel>, #tpu.dimension_semantics<arbitrary>], iteration_bounds = array<i64: 1, 1, 1>, scalar_prefetch = 0 : i64, scratch_operands = 1 : i64, tpu.core_type = #tpu.core_type<tc>, window_params = [{transform_indices = @transform_0, window_bounds = array<i64: 16, 512>}, {transform_indices = @transform_1, window_bounds = array<i64: 512, 512>}, {transform_indices = @transform_2, window_bounds = array<i64: 4, 16, 128>}]} {
    %c0_i32 = arith.constant 0 : i32
    %0 = arith.cmpi eq, %arg2, %c0_i32 : i32
    %1 = arith.extui %0 : i1 to i32
    %c0_i32_0 = arith.constant 0 : i32
    %2 = arith.cmpi ne, %1, %c0_i32_0 : i32
    scf.if %2 {
      %cst_10 = arith.constant 0.000000e+00 : f32
      %12 = vector.broadcast %cst_10 : f32 to vector<16x512xf32>
      %c0_11 = arith.constant 0 : index
      %c0_12 = arith.constant 0 : index
      %13 = vector.load %arg6[%c0_11, %c0_12] : memref<16x512xf32, #tpu.memory_space<vmem>>, vector<16x512xf32>
      tpu.vector_store %arg6[%c0_11, %c0_12], %12 {strides = array<i32>} : memref<16x512xf32, #tpu.memory_space<vmem>>, vector<16x512xf32>,
    } else {
    }
    %c0 = arith.constant 0 : index
    %c0_1 = arith.constant 0 : index
    %3 = vector.load %arg6[%c0, %c0_1] : memref<16x512xf32, #tpu.memory_space<vmem>>, vector<16x512xf32>
    %c0_2 = arith.constant 0 : index
    %c0_3 = arith.constant 0 : index
    %4 = vector.load %arg3[%c0_2, %c0_3] : memref<16x512xf32, #tpu.memory_space<vmem>>, vector<16x512xf32>
    %c0_4 = arith.constant 0 : index
    %c0_5 = arith.constant 0 : index
    %5 = vector.load %arg4[%c0_4, %c0_5] : memref<512x512xf32, #tpu.memory_space<vmem>>, vector<512x512xf32>
    %cst = arith.constant dense<0.000000e+00> : vector<16x512xf32>
    %6 = tpu.matmul %4, %5, %cst {dimension_numbers = #tpu.dot_dimension_numbers<[1], [0], [0], [1], [0, 0, 1, 1], [], []>} : vector<16x512xf32>, vector<512x512xf32>, vector<16x512xf32> -> vector<16x512xf32>
    %7 = arith.addf %3, %6 : vector<16x512xf32>
    %c0_6 = arith.constant 0 : index
    %c0_7 = arith.constant 0 : index
    %8 = vector.load %arg6[%c0_6, %c0_7] : memref<16x512xf32, #tpu.memory_space<vmem>>, vector<16x512xf32>
    tpu.vector_store %arg6[%c0_6, %c0_7], %7 {strides = array<i32>} : memref<16x512xf32, #tpu.memory_space<vmem>>, vector<16x512xf32>,
    %c0_i32_8 = arith.constant 0 : i32
    %9 = arith.cmpi eq, %arg2, %c0_i32_8 : i32
    %10 = arith.extui %9 : i1 to i32
    %c0_i32_9 = arith.constant 0 : i32
    %11 = arith.cmpi ne, %10, %c0_i32_9 : i32
    scf.if %11 {
      %c0_10 = arith.constant 0 : index
      %c0_11 = arith.constant 0 : index
      %12 = vector.load %arg6[%c0_10, %c0_11] : memref<16x512xf32, #tpu.memory_space<vmem>>, vector<16x512xf32>
      %13 = vector.extract_strided_slice %12 {offsets = [0, 0], sizes = [16, 128], strides = [1, 1]} : vector<16x512xf32> to vector<16x128xf32>
      %c0_12 = arith.constant 0 : index
      %c0_13 = arith.constant 0 : index
      %c0_14 = arith.constant 0 : index
      %14 = vector.load %arg5[%c0_12, %c0_13, %c0_14] : memref<4x16x128xf32, #tpu.memory_space<vmem>>, vector<1x16x128xf32>
      %15 = vector.shape_cast %14 : vector<1x16x128xf32> to vector<16x128xf32>
      %16 = vector.shape_cast %13 : vector<16x128xf32> to vector<1x16x128xf32>
      tpu.vector_store %arg5[%c0_12, %c0_13, %c0_14], %16 {strides = array<i32>} : memref<4x16x128xf32, #tpu.memory_space<vmem>>, vector<1x16x128xf32>,
      %17 = vector.extract_strided_slice %12 {offsets = [0, 128], sizes = [16, 128], strides = [1, 1]} : vector<16x512xf32> to vector<16x128xf32>
      %c1 = arith.constant 1 : index
      %c0_15 = arith.constant 0 : index
      %c0_16 = arith.constant 0 : index
      %18 = vector.load %arg5[%c1, %c0_15, %c0_16] : memref<4x16x128xf32, #tpu.memory_space<vmem>>, vector<1x16x128xf32>
      %19 = vector.shape_cast %18 : vector<1x16x128xf32> to vector<16x128xf32>
      %20 = vector.shape_cast %17 : vector<16x128xf32> to vector<1x16x128xf32>
      tpu.vector_store %arg5[%c1, %c0_15, %c0_16], %20 {strides = array<i32>} : memref<4x16x128xf32, #tpu.memory_space<vmem>>, vector<1x16x128xf32>,
      %21 = vector.extract_strided_slice %12 {offsets = [0, 256], sizes = [16, 128], strides = [1, 1]} : vector<16x512xf32> to vector<16x128xf32>
      %c2 = arith.constant 2 : index
      %c0_17 = arith.constant 0 : index
      %c0_18 = arith.constant 0 : index
      %22 = vector.load %arg5[%c2, %c0_17, %c0_18] : memref<4x16x128xf32, #tpu.memory_space<vmem>>, vector<1x16x128xf32>
      %23 = vector.shape_cast %22 : vector<1x16x128xf32> to vector<16x128xf32>
      %24 = vector.shape_cast %21 : vector<16x128xf32> to vector<1x16x128xf32>
      tpu.vector_store %arg5[%c2, %c0_17, %c0_18], %24 {strides = array<i32>} : memref<4x16x128xf32, #tpu.memory_space<vmem>>, vector<1x16x128xf32>,
      %25 = vector.extract_strided_slice %12 {offsets = [0, 384], sizes = [16, 128], strides = [1, 1]} : vector<16x512xf32> to vector<16x128xf32>
      %c3 = arith.constant 3 : index
      %c0_19 = arith.constant 0 : index
      %c0_20 = arith.constant 0 : index
      %26 = vector.load %arg5[%c3, %c0_19, %c0_20] : memref<4x16x128xf32, #tpu.memory_space<vmem>>, vector<1x16x128xf32>
      %27 = vector.shape_cast %26 : vector<1x16x128xf32> to vector<16x128xf32>
      %28 = vector.shape_cast %25 : vector<16x128xf32> to vector<1x16x128xf32>
      tpu.vector_store %arg5[%c3, %c0_19, %c0_20], %28 {strides = array<i32>} : memref<4x16x128xf32, #tpu.memory_space<vmem>>, vector<1x16x128xf32>,
    } else {
    }
    return
  }
  func.func @transform_0(%arg0: i32, %arg1: i32, %arg2: i32) -> (i32, i32) {
    %c0_i32 = arith.constant 0 : i32
    return %arg0, %arg2 : i32, i32
  }
  func.func @transform_1(%arg0: i32, %arg1: i32, %arg2: i32) -> (i32, i32) {
    %c0_i32 = arith.constant 0 : i32
    return %arg2, %arg1 : i32, i32
  }
  func.func @transform_2(%arg0: i32, %arg1: i32, %arg2: i32) -> (i32, i32, i32) {
    %c0_i32 = arith.constant 0 : i32
    %c0_i32_0 = arith.constant 0 : i32
    return %arg1, %arg0, %c0_i32 : i32, i32, i32
  }
}

</mosaic_0001>

<llo_original>
// kernel: tpu_custom_call.1
$region0: #{tpu_custom_call.1}
  #allocation0 [shape = 'u32[]', space=smem, size = 0x4, offset = 0x4, fixed_abs, tag = 'smem constant byte address 0x4 - core index']
  #allocation1 [shape = 'u32[144,128]{1,0:T(1,128)}', space=vmem, size = 0x12000, scoped, tag = 'internal scratch']
  #allocation2 [shape = 'f32[16,512]{1,0:T(8,128)}', space=vmem, size = 0x8000, scoped, tag = 'scratch operand']
  %s0 = inlined_call_operand.hbm [shape: f32[16,512], index: 0, kind: input, shape index: {}]
  %s1 = inlined_call_operand.hbm [shape: f32[512,512], index: 1, kind: input, shape index: {}]
  %s2 = inlined_call_operand.hbm [shape: f32[4,16,128], index: 2, kind: output, shape index: {}]
  %s3 = sld [smem:[#allocation0]]
  $region34: #{tpu_custom_call.1} parent=0
    _
  %s5 = ssub.s32 1, %s3
  %s6 = scalar_select 0, %s5, %s3
  $region1: #{tpu_custom_call.1} parent=0
    #allocation3 [shape = 'u8[32768]{0}', space=vmem, size = 0x8000, scoped, tag = 'input window, operand 0, single buffered']
    #allocation4 [shape = 's32[1]{0}', space=sflag, size = 0x4, scoped, tag = 'scoped memory for tpu_custom_call.1']
    #allocation5 [shape = 's32[1]{0}', space=sflag, size = 0x4, scoped, tag = 'scoped memory for tpu_custom_call.1']
    #allocation6 [shape = 'u8[1048576]{0}', space=vmem, size = 0x100000, scoped, tag = 'input window, operand 1, single buffered']
    #allocation7 [shape = 's32[1]{0}', space=sflag, size = 0x4, scoped, tag = 'scoped memory for tpu_custom_call.1']
    #allocation8 [shape = 'u8[32768]{0}', space=vmem, size = 0x8000, scoped, tag = 'output window, operand 0, single buffered']
    %7 = vsyncpa [#allocation4], 0
    %8 = vsyncpa [#allocation7], 0
    %9 = vsyncpa [#allocation5], 0
    // Predicated region
    $region2: #{tpu_custom_call.1} parent=1 // pred_check
      _
    $region3: #{tpu_custom_call.1} parent=1 // pred_check_branch
      %11 = sbr.rel (0) target = $region5
    $region4: #{tpu_custom_call.1} parent=1 // pred_region
      %s13 = ssub.s32 1024, 1024
      %14 = vsyncadd [#allocation4], %s13
      %s15 = sshll.u32 [#allocation3], 4
      %s16 = int_to_ptr.vmem [resolvable:$true] %s15
      %21 = dma.hbm_to_vmem [thread:$0]  %s0, 1024, %s16, [#allocation4], 512, 512, 32
    $region5: #{tpu_custom_call.1} parent=1 // pred_fallthru
      _
    // Predicated region
    $region6: #{tpu_custom_call.1} parent=1 // pred_check
      _
    $region7: #{tpu_custom_call.1} parent=1 // pred_check_branch
      %23 = sbr.rel (0) target = $region9
    $region8: #{tpu_custom_call.1} parent=1 // pred_region
      %s25 = ssub.s32 32768, 32768
      %26 = vsyncadd [#allocation7], %s25
      %s27 = sshll.u32 [#allocation6], 4
      %s28 = int_to_ptr.vmem [resolvable:$true] %s27
      %33 = dma.hbm_to_vmem [thread:$0]  %s1, 32768, %s28, [#allocation7], 512, 512, 32
    $region9: #{tpu_custom_call.1} parent=1 // pred_fallthru
      _
    // Predicated region
    $region10: #{tpu_custom_call.1} parent=1 // pred_check
      _
    $region11: #{tpu_custom_call.1} parent=1 // pred_check_branch
      %35 = sbr.rel (0) target = $region13
    $region12: #{tpu_custom_call.1} parent=1 // pred_region
      %36 = dma.done [#allocation4], 1024
    $region13: #{tpu_custom_call.1} parent=1 // pred_fallthru
      _
    // Predicated region
    $region14: #{tpu_custom_call.1} parent=1 // pred_check
      _
    $region15: #{tpu_custom_call.1} parent=1 // pred_check_branch
      %38 = sbr.rel (0) target = $region17
    $region16: #{tpu_custom_call.1} parent=1 // pred_region
      %39 = dma.done [#allocation7], 32768
    $region17: #{tpu_custom_call.1} parent=1 // pred_fallthru
      _
    %p40 = scmp.eq.s32.totalorder 0, 0
    // Predicated region
    $region18: #{tpu_custom_call.1} parent=1 // pred_check
      %p41 = pneg %p40
    $region19: #{tpu_custom_call.1} parent=1 // pred_check_branch
      %43 = sbr.rel (%p41) target = $region21
    $region20: #{tpu_custom_call.1} parent=1 // pred_region
      %44 = vst [vmem:[#allocation2] sm:$0xff] 0.0
      %45 = vst [vmem:[#allocation2 + $0x8] sm:$0xff] 0.0
      %46 = vst [vmem:[#allocation2 + $0x10] sm:$0xff] 0.0
      %47 = vst [vmem:[#allocation2 + $0x18] sm:$0xff] 0.0
      %48 = vst [vmem:[#allocation2 + $0x20] sm:$0xff] 0.0
      %49 = vst [vmem:[#allocation2 + $0x28] sm:$0xff] 0.0
      %50 = vst [vmem:[#allocation2 + $0x30] sm:$0xff] 0.0
      %51 = vst [vmem:[#allocation2 + $0x38] sm:$0xff] 0.0
    $region21: #{tpu_custom_call.1} parent=1 // pred_fallthru
      _
    %v52 = vld [vmem:[#allocation2] sm:$0xff]
    %v53 = vld [vmem:[#allocation2 + $0x8] sm:$0xff]
    %v54 = vld [vmem:[#allocation2 + $0x10] sm:$0xff]
    %v55 = vld [vmem:[#allocation2 + $0x18] sm:$0xff]
    %v56 = vld [vmem:[#allocation2 + $0x20] sm:$0xff]
    %v57 = vld [vmem:[#allocation2 + $0x28] sm:$0xff]
    %v58 = vld [vmem:[#allocation2 + $0x30] sm:$0xff]
    %v59 = vld [vmem:[#allocation2 + $0x38] sm:$0xff]
    %v60 = vld [vmem:[#allocation3] sm:$0xff]
    %v61 = vld [vmem:[#allocation3 + $0x8] sm:$0xff]
    %v62 = vld [vmem:[#allocation3 + $0x10] sm:$0xff]
    %v63 = vld [vmem:[#allocation3 + $0x18] sm:$0xff]
    %v64 = vld [vmem:[#allocation3 + $0x20] sm:$0xff]
    %v65 = vld [vmem:[#allocation3 + $0x28] sm:$0xff]
    %v66 = vld [vmem:[#allocation3 + $0x30] sm:$0xff]
    %v67 = vld [vmem:[#allocation3 + $0x38] sm:$0xff]
    %v68 = vld [vmem:[#allocation6] sm:$0xff]
    %v69 = vld [vmem:[#allocation6 + $0x8] sm:$0xff]
    %v70 = vld [vmem:[#allocation6 + $0x10] sm:$0xff]
    %v71 = vld [vmem:[#allocation6 + $0x18] sm:$0xff]
    %v72 = vld [vmem:[#allocation6 + $0x20] sm:$0xff]
    %v73 = vld [vmem:[#allocation6 + $0x28] sm:$0xff]
    %v74 = vld [vmem:[#allocation6 + $0x30] sm:$0xff]
    %v75 = vld [vmem:[#allocation6 + $0x38] sm:$0xff]
    %v76 = vld [vmem:[#allocation6 + $0x40] sm:$0xff]
    %v77 = vld [vmem:[#allocation6 + $0x48] sm:$0xff]
    %v78 = vld [vmem:[#allocation6 + $0x50] sm:$0xff]
    %v79 = vld [vmem:[#allocation6 + $0x58] sm:$0xff]
    %v80 = vld [vmem:[#allocation6 + $0x60] sm:$0xff]
    %v81 = vld [vmem:[#allocation6 + $0x68] sm:$0xff]
    %v82 = vld [vmem:[#allocation6 + $0x70] sm:$0xff]
    %v83 = vld [vmem:[#allocation6 + $0x78] sm:$0xff]
    %v84 = vld [vmem:[#allocation6 + $0x80] sm:$0xff]
    %v85 = vld [vmem:[#allocation6 + $0x88] sm:$0xff]
    %v86 = vld [vmem:[#allocation6 + $0x90] sm:$0xff]
    %v87 = vld [vmem:[#allocation6 + $0x98] sm:$0xff]
    %v88 = vld [vmem:[#allocation6 + $0xa0] sm:$0xff]
    %v89 = vld [vmem:[#allocation6 + $0xa8] sm:$0xff]
    %v90 = vld [vmem:[#allocation6 + $0xb0] sm:$0xff]
    %v91 = vld [vmem:[#allocation6 + $0xb8] sm:$0xff]
    %v92 = vld [vmem:[#allocation6 + $0xc0] sm:$0xff]
    %v93 = vld [vmem:[#allocation6 + $0xc8] sm:$0xff]
    %v94 = vld [vmem:[#allocation6 + $0xd0] sm:$0xff]
    %v95 = vld [vmem:[#allocation6 + $0xd8] sm:$0xff]
    %v96 = vld [vmem:[#allocation6 + $0xe0] sm:$0xff]
    %v97 = vld [vmem:[#allocation6 + $0xe8] sm:$0xff]
    %v98 = vld [vmem:[#allocation6 + $0xf0] sm:$0xff]
    %v99 = vld [vmem:[#allocation6 + $0xf8] sm:$0xff]
    %v100 = vld [vmem:[#allocation6 + $0x100] sm:$0xff]
    %v101 = vld [vmem:[#allocation6 + $0x108] sm:$0xff]
    %v102 = vld [vmem:[#allocation6 + $0x110] sm:$0xff]
    %v103 = vld [vmem:[#allocation6 + $0x118] sm:$0xff]
    %v104 = vld [vmem:[#allocation6 + $0x120] sm:$0xff]
    %v105 = vld [vmem:[#allocation6 + $0x128] sm:$0xff]
    %v106 = vld [vmem:[#allocation6 + $0x130] sm:$0xff]
    %v107 = vld [vmem:[#allocation6 + $0x138] sm:$0xff]
    %v108 = vld [vmem:[#allocation6 + $0x140] sm:$0xff]
    %v109 = vld [vmem:[#allocation6 + $0x148] sm:$0xff]
    %v110 = vld [vmem:[#allocation6 + $0x150] sm:$0xff]
    %v111 = vld [vmem:[#allocation6 + $0x158] sm:$0xff]
    %v112 = vld [vmem:[#allocation6 + $0x160] sm:$0xff]
    %v113 = vld [vmem:[#allocation6 + $0x168] sm:$0xff]
    %v114 = vld [vmem:[#allocation6 + $0x170] sm:$0xff]
    %v115 = vld [vmem:[#allocation6 + $0x178] sm:$0xff]
    %v116 = vld [vmem:[#allocation6 + $0x180] sm:$0xff]
    %v117 = vld [vmem:[#allocation6 + $0x188] sm:$0xff]
    %v118 = vld [vmem:[#allocation6 + $0x190] sm:$0xff]
    %v119 = vld [vmem:[#allocation6 + $0x198] sm:$0xff]
    %v120 = vld [vmem:[#allocation6 + $0x1a0] sm:$0xff]
    %v121 = vld [vmem:[#allocation6 + $0x1a8] sm:$0xff]
    %v122 = vld [vmem:[#allocation6 + $0x1b0] sm:$0xff]
    %v123 = vld [vmem:[#allocation6 + $0x1b8] sm:$0xff]
    %v124 = vld [vmem:[#allocation6 + $0x1c0] sm:$0xff]
    %v125 = vld [vmem:[#allocation6 + $0x1c8] sm:$0xff]
    %v126 = vld [vmem:[#allocation6 + $0x1d0] sm:$0xff]
    %v127 = vld [vmem:[#allocation6 + $0x1d8] sm:$0xff]
    %v128 = vld [vmem:[#allocation6 + $0x1e0] sm:$0xff]
    %v129 = vld [vmem:[#allocation6 + $0x1e8] sm:$0xff]
    %v130 = vld [vmem:[#allocation6 + $0x1f0] sm:$0xff]
    %v131 = vld [vmem:[#allocation6 + $0x1f8] sm:$0xff]
    %v132 = vld [vmem:[#allocation6 + $0x200] sm:$0xff]
    %v133 = vld [vmem:[#allocation6 + $0x208] sm:$0xff]
    %v134 = vld [vmem:[#allocation6 + $0x210] sm:$0xff]
    %v135 = vld [vmem:[#allocation6 + $0x218] sm:$0xff]
    %v136 = vld [vmem:[#allocation6 + $0x220] sm:$0xff]
    %v137 = vld [vmem:[#allocation6 + $0x228] sm:$0xff]
    %v138 = vld [vmem:[#allocation6 + $0x230] sm:$0xff]
    %v139 = vld [vmem:[#allocation6 + $0x238] sm:$0xff]
    %v140 = vld [vmem:[#allocation6 + $0x240] sm:$0xff]
    %v141 = vld [vmem:[#allocation6 + $0x248] sm:$0xff]
    %v142 = vld [vmem:[#allocation6 + $0x250] sm:$0xff]
    %v143 = vld [vmem:[#allocation6 + $0x258] sm:$0xff]
    %v144 = vld [vmem:[#allocation6 + $0x260] sm:$0xff]
    %v145 = vld [vmem:[#allocation6 + $0x268] sm:$0xff]
    %v146 = vld [vmem:[#allocation6 + $0x270] sm:$0xff]
    %v147 = vld [vmem:[#allocation6 + $0x278] sm:$0xff]
    %v148 = vld [vmem:[#allocation6 + $0x280] sm:$0xff]
    %v149 = vld [vmem:[#allocation6 + $0x288] sm:$0xff]
    %v150 = vld [vmem:[#allocation6 + $0x290] sm:$0xff]
    %v151 = vld [vmem:[#allocation6 + $0x298] sm:$0xff]
    %v152 = vld [vmem:[#allocation6 + $0x2a0] sm:$0xff]
    %v153 = vld [vmem:[#allocation6 + $0x2a8] sm:$0xff]
    %v154 = vld [vmem:[#allocation6 + $0x2b0] sm:$0xff]
    %v155 = vld [vmem:[#allocation6 + $0x2b8] sm:$0xff]
    %v156 = vld [vmem:[#allocation6 + $0x2c0] sm:$0xff]
    %v157 = vld [vmem:[#allocation6 + $0x2c8] sm:$0xff]
    %v158 = vld [vmem:[#allocation6 + $0x2d0] sm:$0xff]
    %v159 = vld [vmem:[#allocation6 + $0x2d8] sm:$0xff]
    %v160 = vld [vmem:[#allocation6 + $0x2e0] sm:$0xff]
    %v161 = vld [vmem:[#allocation6 + $0x2e8] sm:$0xff]
    %v162 = vld [vmem:[#allocation6 + $0x2f0] sm:$0xff]
    %v163 = vld [vmem:[#allocation6 + $0x2f8] sm:$0xff]
    %v164 = vld [vmem:[#allocation6 + $0x300] sm:$0xff]
    %v165 = vld [vmem:[#allocation6 + $0x308] sm:$0xff]
    %v166 = vld [vmem:[#allocation6 + $0x310] sm:$0xff]
    %v167 = vld [vmem:[#allocation6 + $0x318] sm:$0xff]
    %v168 = vld [vmem:[#allocation6 + $0x320] sm:$0xff]
    %v169 = vld [vmem:[#allocation6 + $0x328] sm:$0xff]
    %v170 = vld [vmem:[#allocation6 + $0x330] sm:$0xff]
    %v171 = vld [vmem:[#allocation6 + $0x338] sm:$0xff]
    %v172 = vld [vmem:[#allocation6 + $0x340] sm:$0xff]
    %v173 = vld [vmem:[#allocation6 + $0x348] sm:$0xff]
    %v174 = vld [vmem:[#allocation6 + $0x350] sm:$0xff]
    %v175 = vld [vmem:[#allocation6 + $0x358] sm:$0xff]
    %v176 = vld [vmem:[#allocation6 + $0x360] sm:$0xff]
    %v177 = vld [vmem:[#allocation6 + $0x368] sm:$0xff]
    %v178 = vld [vmem:[#allocation6 + $0x370] sm:$0xff]
    %v179 = vld [vmem:[#allocation6 + $0x378] sm:$0xff]
    %v180 = vld [vmem:[#allocation6 + $0x380] sm:$0xff]
    %v181 = vld [vmem:[#allocation6 + $0x388] sm:$0xff]
    %v182 = vld [vmem:[#allocation6 + $0x390] sm:$0xff]
    %v183 = vld [vmem:[#allocation6 + $0x398] sm:$0xff]
    %v184 = vld [vmem:[#allocation6 + $0x3a0] sm:$0xff]
    %v185 = vld [vmem:[#allocation6 + $0x3a8] sm:$0xff]
    %v186 = vld [vmem:[#allocation6 + $0x3b0] sm:$0xff]
    %v187 = vld [vmem:[#allocation6 + $0x3b8] sm:$0xff]
    %v188 = vld [vmem:[#allocation6 + $0x3c0] sm:$0xff]
    %v189 = vld [vmem:[#allocation6 + $0x3c8] sm:$0xff]
    %v190 = vld [vmem:[#allocation6 + $0x3d0] sm:$0xff]
    %v191 = vld [vmem:[#allocation6 + $0x3d8] sm:$0xff]
    %v192 = vld [vmem:[#allocation6 + $0x3e0] sm:$0xff]
    %v193 = vld [vmem:[#allocation6 + $0x3e8] sm:$0xff]
    %v194 = vld [vmem:[#allocation6 + $0x3f0] sm:$0xff]
    %v195 = vld [vmem:[#allocation6 + $0x3f8] sm:$0xff]
    %v196 = vld [vmem:[#allocation6 + $0x400] sm:$0xff]
    %v197 = vld [vmem:[#allocation6 + $0x408] sm:$0xff]
    %v198 = vld [vmem:[#allocation6 + $0x410] sm:$0xff]
    %v199 = vld [vmem:[#allocation6 + $0x418] sm:$0xff]
    %v200 = vld [vmem:[#allocation6 + $0x420] sm:$0xff]
    %v201 = vld [vmem:[#allocation6 + $0x428] sm:$0xff]
    %v202 = vld [vmem:[#allocation6 + $0x430] sm:$0xff]
    %v203 = vld [vmem:[#allocation6 + $0x438] sm:$0xff]
    %v204 = vld [vmem:[#allocation6 + $0x440] sm:$0xff]
    %v205 = vld [vmem:[#allocation6 + $0x448] sm:$0xff]
    %v206 = vld [vmem:[#allocation6 + $0x450] sm:$0xff]
    %v207 = vld [vmem:[#allocation6 + $0x458] sm:$0xff]
    %v208 = vld [vmem:[#allocation6 + $0x460] sm:$0xff]
    %v209 = vld [vmem:[#allocation6 + $0x468] sm:$0xff]
    %v210 = vld [vmem:[#allocation6 + $0x470] sm:$0xff]
    %v211 = vld [vmem:[#allocation6 + $0x478] sm:$0xff]
    %v212 = vld [vmem:[#allocation6 + $0x480] sm:$0xff]
    %v213 = vld [vmem:[#allocation6 + $0x488] sm:$0xff]
    %v214 = vld [vmem:[#allocation6 + $0x490] sm:$0xff]
    %v215 = vld [vmem:[#allocation6 + $0x498] sm:$0xff]
    %v216 = vld [vmem:[#allocation6 + $0x4a0] sm:$0xff]
    %v217 = vld [vmem:[#allocation6 + $0x4a8] sm:$0xff]
    %v218 = vld [vmem:[#allocation6 + $0x4b0] sm:$0xff]
    %v219 = vld [vmem:[#allocation6 + $0x4b8] sm:$0xff]
    %v220 = vld [vmem:[#allocation6 + $0x4c0] sm:$0xff]
    %v221 = vld [vmem:[#allocation6 + $0x4c8] sm:$0xff]
    %v222 = vld [vmem:[#allocation6 + $0x4d0] sm:$0xff]
    %v223 = vld [vmem:[#allocation6 + $0x4d8] sm:$0xff]
    %v224 = vld [vmem:[#allocation6 + $0x4e0] sm:$0xff]
    %v225 = vld [vmem:[#allocation6 + $0x4e8] sm:$0xff]
    %v226 = vld [vmem:[#allocation6 + $0x4f0] sm:$0xff]
    %v227 = vld [vmem:[#allocation6 + $0x4f8] sm:$0xff]
    %v228 = vld [vmem:[#allocation6 + $0x500] sm:$0xff]
    %v229 = vld [vmem:[#allocation6 + $0x508] sm:$0xff]
    %v230 = vld [vmem:[#allocation6 + $0x510] sm:$0xff]
    %v231 = vld [vmem:[#allocation6 + $0x518] sm:$0xff]
    %v232 = vld [vmem:[#allocation6 + $0x520] sm:$0xff]
    %v233 = vld [vmem:[#allocation6 + $0x528] sm:$0xff]
    %v234 = vld [vmem:[#allocation6 + $0x530] sm:$0xff]
    %v235 = vld [vmem:[#allocation6 + $0x538] sm:$0xff]
    %v236 = vld [vmem:[#allocation6 + $0x540] sm:$0xff]
    %v237 = vld [vmem:[#allocation6 + $0x548] sm:$0xff]
    %v238 = vld [vmem:[#allocation6 + $0x550] sm:$0xff]
    %v239 = vld [vmem:[#allocation6 + $0x558] sm:$0xff]
    %v240 = vld [vmem:[#allocation6 + $0x560] sm:$0xff]
    %v241 = vld [vmem:[#allocation6 + $0x568] sm:$0xff]
    %v242 = vld [vmem:[#allocation6 + $0x570] sm:$0xff]
    %v243 = vld [vmem:[#allocation6 + $0x578] sm:$0xff]
    %v244 = vld [vmem:[#allocation6 + $0x580] sm:$0xff]
    %v245 = vld [vmem:[#allocation6 + $0x588] sm:$0xff]
    %v246 = vld [vmem:[#allocation6 + $0x590] sm:$0xff]
    %v247 = vld [vmem:[#allocation6 + $0x598] sm:$0xff]
    %v248 = vld [vmem:[#allocation6 + $0x5a0] sm:$0xff]
    %v249 = vld [vmem:[#allocation6 + $0x5a8] sm:$0xff]
    %v250 = vld [vmem:[#allocation6 + $0x5b0] sm:$0xff]
    %v251 = vld [vmem:[#allocation6 + $0x5b8] sm:$0xff]
    %v252 = vld [vmem:[#allocation6 + $0x5c0] sm:$0xff]
    %v253 = vld [vmem:[#allocation6 + $0x5c8] sm:$0xff]
    %v254 = vld [vmem:[#allocation6 + $0x5d0] sm:$0xff]
    %v255 = vld [vmem:[#allocation6 + $0x5d8] sm:$0xff]
    %v256 = vld [vmem:[#allocation6 + $0x5e0] sm:$0xff]
    %v257 = vld [vmem:[#allocation6 + $0x5e8] sm:$0xff]
    %v258 = vld [vmem:[#allocation6 + $0x5f0] sm:$0xff]
    %v259 = vld [vmem:[#allocation6 + $0x5f8] sm:$0xff]
    %v260 = vld [vmem:[#allocation6 + $0x600] sm:$0xff]
    %v261 = vld [vmem:[#allocation6 + $0x608] sm:$0xff]
    %v262 = vld [vmem:[#allocation6 + $0x610] sm:$0xff]
    %v263 = vld [vmem:[#allocation6 + $0x618] sm:$0xff]
    %v264 = vld [vmem:[#allocation6 + $0x620] sm:$0xff]
    %v265 = vld [vmem:[#allocation6 + $0x628] sm:$0xff]
    %v266 = vld [vmem:[#allocation6 + $0x630] sm:$0xff]
    %v267 = vld [vmem:[#allocation6 + $0x638] sm:$0xff]
    %v268 = vld [vmem:[#allocation6 + $0x640] sm:$0xff]
    %v269 = vld [vmem:[#allocation6 + $0x648] sm:$0xff]
    %v270 = vld [vmem:[#allocation6 + $0x650] sm:$0xff]
    %v271 = vld [vmem:[#allocation6 + $0x658] sm:$0xff]
    %v272 = vld [vmem:[#allocation6 + $0x660] sm:$0xff]
    %v273 = vld [vmem:[#allocation6 + $0x668] sm:$0xff]
    %v274 = vld [vmem:[#allocation6 + $0x670] sm:$0xff]
    %v275 = vld [vmem:[#allocation6 + $0x678] sm:$0xff]
    %v276 = vld [vmem:[#allocation6 + $0x680] sm:$0xff]
    %v277 = vld [vmem:[#allocation6 + $0x688] sm:$0xff]
    %v278 = vld [vmem:[#allocation6 + $0x690] sm:$0xff]
    %v279 = vld [vmem:[#allocation6 + $0x698] sm:$0xff]
    %v280 = vld [vmem:[#allocation6 + $0x6a0] sm:$0xff]
    %v281 = vld [vmem:[#allocation6 + $0x6a8] sm:$0xff]
    %v282 = vld [vmem:[#allocation6 + $0x6b0] sm:$0xff]
    %v283 = vld [vmem:[#allocation6 + $0x6b8] sm:$0xff]
    %v284 = vld [vmem:[#allocation6 + $0x6c0] sm:$0xff]
    %v285 = vld [vmem:[#allocation6 + $0x6c8] sm:$0xff]
    %v286 = vld [vmem:[#allocation6 + $0x6d0] sm:$0xff]
    %v287 = vld [vmem:[#allocation6 + $0x6d8] sm:$0xff]
    %v288 = vld [vmem:[#allocation6 + $0x6e0] sm:$0xff]
    %v289 = vld [vmem:[#allocation6 + $0x6e8] sm:$0xff]
    %v290 = vld [vmem:[#allocation6 + $0x6f0] sm:$0xff]
    %v291 = vld [vmem:[#allocation6 + $0x6f8] sm:$0xff]
    %v292 = vld [vmem:[#allocation6 + $0x700] sm:$0xff]
    %v293 = vld [vmem:[#allocation6 + $0x708] sm:$0xff]
    %v294 = vld [vmem:[#allocation6 + $0x710] sm:$0xff]
    %v295 = vld [vmem:[#allocation6 + $0x718] sm:$0xff]
    %v296 = vld [vmem:[#allocation6 + $0x720] sm:$0xff]
    %v297 = vld [vmem:[#allocation6 + $0x728] sm:$0xff]
    %v298 = vld [vmem:[#allocation6 + $0x730] sm:$0xff]
    %v299 = vld [vmem:[#allocation6 + $0x738] sm:$0xff]
    %v300 = vld [vmem:[#allocation6 + $0x740] sm:$0xff]
    %v301 = vld [vmem:[#allocation6 + $0x748] sm:$0xff]
    %v302 = vld [vmem:[#allocation6 + $0x750] sm:$0xff]
    %v303 = vld [vmem:[#allocation6 + $0x758] sm:$0xff]
    %v304 = vld [vmem:[#allocation6 + $0x760] sm:$0xff]
    %v305 = vld [vmem:[#allocation6 + $0x768] sm:$0xff]
    %v306 = vld [vmem:[#allocation6 + $0x770] sm:$0xff]
    %v307 = vld [vmem:[#allocation6 + $0x778] sm:$0xff]
    %v308 = vld [vmem:[#allocation6 + $0x780] sm:$0xff]
    %v309 = vld [vmem:[#allocation6 + $0x788] sm:$0xff]
    %v310 = vld [vmem:[#allocation6 + $0x790] sm:$0xff]
    %v311 = vld [vmem:[#allocation6 + $0x798] sm:$0xff]
    %v312 = vld [vmem:[#allocation6 + $0x7a0] sm:$0xff]
    %v313 = vld [vmem:[#allocation6 + $0x7a8] sm:$0xff]
    %v314 = vld [vmem:[#allocation6 + $0x7b0] sm:$0xff]
    %v315 = vld [vmem:[#allocation6 + $0x7b8] sm:$0xff]
    %v316 = vld [vmem:[#allocation6 + $0x7c0] sm:$0xff]
    %v317 = vld [vmem:[#allocation6 + $0x7c8] sm:$0xff]
    %v318 = vld [vmem:[#allocation6 + $0x7d0] sm:$0xff]
    %v319 = vld [vmem:[#allocation6 + $0x7d8] sm:$0xff]
    %v320 = vld [vmem:[#allocation6 + $0x7e0] sm:$0xff]
    %v321 = vld [vmem:[#allocation6 + $0x7e8] sm:$0xff]
    %v322 = vld [vmem:[#allocation6 + $0x7f0] sm:$0xff]
    %v323 = vld [vmem:[#allocation6 + $0x7f8] sm:$0xff]
    %324 = vmatprep.subr.mxu0 %v129
    %325 = vmatpush1.msra.mxu0 %v128
    %326 = vmatprep.subr.mxu0 %v125
    %327 = vmatpush1.msra.mxu0 %v124
    %328 = vmatprep.subr.mxu0 %v121
    %329 = vmatpush1.msra.mxu0 %v120
    %330 = vmatprep.subr.mxu0 %v117
    %331 = vmatpush1.msra.mxu0 %v116
    %332 = vmatprep.subr.mxu0 %v113
    %333 = vmatpush1.msra.mxu0 %v112
    %334 = vmatprep.subr.mxu0 %v109
    %335 = vmatpush1.msra.mxu0 %v108
    %336 = vmatprep.subr.mxu0 %v105
    %337 = vmatpush1.msra.mxu0 %v104
    %338 = vmatprep.subr.mxu0 %v101
    %339 = vmatpush1.msra.mxu0 %v100
    %340 = vmatprep.subr.mxu0 %v97
    %341 = vmatpush1.msra.mxu0 %v96
    %342 = vmatprep.subr.mxu0 %v93
    %343 = vmatpush1.msra.mxu0 %v92
    %344 = vmatprep.subr.mxu0 %v89
    %345 = vmatpush1.msra.mxu0 %v88
    %346 = vmatprep.subr.mxu0 %v85
    %347 = vmatpush1.msra.mxu0 %v84
    %348 = vmatprep.subr.mxu0 %v81
    %349 = vmatpush1.msra.mxu0 %v80
    %350 = vmatprep.subr.mxu0 %v77
    %351 = vmatpush1.msra.mxu0 %v76
    %352 = vmatprep.subr.mxu0 %v73
    %353 = vmatpush1.msra.mxu0 %v72
    %354 = vmatprep.subr.mxu0 %v69
    %355 = vmatpush1.msra.mxu0 %v68
    %356 = vmatprep.subr.mxu0 %v193
    %357 = vmatpush2.msra.mxu0 %v192
    %358 = vmatprep.subr.mxu0 %v189
    %359 = vmatpush2.msra.mxu0 %v188
    %360 = vmatprep.subr.mxu0 %v185
    %361 = vmatpush2.msra.mxu0 %v184
    %362 = vmatprep.subr.mxu0 %v181
    %363 = vmatpush2.msra.mxu0 %v180
    %364 = vmatprep.subr.mxu0 %v177
    %365 = vmatpush2.msra.mxu0 %v176
    %366 = vmatprep.subr.mxu0 %v173
    %367 = vmatpush2.msra.mxu0 %v172
    %368 = vmatprep.subr.mxu0 %v169
    %369 = vmatpush2.msra.mxu0 %v168
    %370 = vmatprep.subr.mxu0 %v165
    %371 = vmatpush2.msra.mxu0 %v164
    %372 = vmatprep.subr.mxu0 %v161
    %373 = vmatpush2.msra.mxu0 %v160
    %374 = vmatprep.subr.mxu0 %v157
    %375 = vmatpush2.msra.mxu0 %v156
    %376 = vmatprep.subr.mxu0 %v153
    %377 = vmatpush2.msra.mxu0 %v152
    %378 = vmatprep.subr.mxu0 %v149
    %379 = vmatpush2.msra.mxu0 %v148
    %380 = vmatprep.subr.mxu0 %v145
    %381 = vmatpush2.msra.mxu0 %v144
    %382 = vmatprep.subr.mxu0 %v141
    %383 = vmatpush2.msra.mxu0 %v140
    %384 = vmatprep.subr.mxu0 %v137
    %385 = vmatpush2.msra.mxu0 %v136
    %386 = vmatprep.subr.mxu0 %v133
    %387 = vmatpush2.msra.mxu0 %v132
    %388 = vmatprep.mubr.f32.mxu0 %v61
    %389 = vmatmul.mubr.f32.gmra.mxu0 %v60
    %v390 = vpop.f32.mrf.mxu0
    %v391 = vadd.f32 0.0, %v390
    %v392 = vpop.f32.mrf.mxu0
    %v393 = vadd.f32 0.0, %v392
    %394 = vmatprep.mubr.f32.mxu0 %v65
    %395 = vmatmul.mubr.f32.gmra.mxu0 %v64
    %v396 = vpop.f32.mrf.mxu0
    %v397 = vadd.f32 0.0, %v396
    %v398 = vpop.f32.mrf.mxu0
    %v399 = vadd.f32 0.0, %v398
    %400 = vdwg.mxu0
    %401 = vmatprep.subr.mxu0 %v257
    %402 = vmatpush1.msra.mxu0 %v256
    %403 = vmatprep.subr.mxu0 %v253
    %404 = vmatpush1.msra.mxu0 %v252
    %405 = vmatprep.subr.mxu0 %v249
    %406 = vmatpush1.msra.mxu0 %v248
    %407 = vmatprep.subr.mxu0 %v245
    %408 = vmatpush1.msra.mxu0 %v244
    %409 = vmatprep.subr.mxu0 %v241
    %410 = vmatpush1.msra.mxu0 %v240
    %411 = vmatprep.subr.mxu0 %v237
    %412 = vmatpush1.msra.mxu0 %v236
    %413 = vmatprep.subr.mxu0 %v233
    %414 = vmatpush1.msra.mxu0 %v232
    %415 = vmatprep.subr.mxu0 %v229
    %416 = vmatpush1.msra.mxu0 %v228
    %417 = vmatprep.subr.mxu0 %v225
    %418 = vmatpush1.msra.mxu0 %v224
    %419 = vmatprep.subr.mxu0 %v221
    %420 = vmatpush1.msra.mxu0 %v220
    %421 = vmatprep.subr.mxu0 %v217
    %422 = vmatpush1.msra.mxu0 %v216
    %423 = vmatprep.subr.mxu0 %v213
    %424 = vmatpush1.msra.mxu0 %v212
    %425 = vmatprep.subr.mxu0 %v209
    %426 = vmatpush1.msra.mxu0 %v208
    %427 = vmatprep.subr.mxu0 %v205
    %428 = vmatpush1.msra.mxu0 %v204
    %429 = vmatprep.subr.mxu0 %v201
    %430 = vmatpush1.msra.mxu0 %v200
    %431 = vmatprep.subr.mxu0 %v197
    %432 = vmatpush1.msra.mxu0 %v196
    %433 = vmatprep.subr.mxu0 %v321
    %434 = vmatpush2.msra.mxu0 %v320
    %435 = vmatprep.subr.mxu0 %v317
    %436 = vmatpush2.msra.mxu0 %v316
    %437 = vmatprep.subr.mxu0 %v313
    %438 = vmatpush2.msra.mxu0 %v312
    %439 = vmatprep.subr.mxu0 %v309
    %440 = vmatpush2.msra.mxu0 %v308
    %441 = vmatprep.subr.mxu0 %v305
    %442 = vmatpush2.msra.mxu0 %v304
    %443 = vmatprep.subr.mxu0 %v301
    %444 = vmatpush2.msra.mxu0 %v300
    %445 = vmatprep.subr.mxu0 %v297
    %446 = vmatpush2.msra.mxu0 %v296
    %447 = vmatprep.subr.mxu0 %v293
    %448 = vmatpush2.msra.mxu0 %v292
    %449 = vmatprep.subr.mxu0 %v289
    %450 = vmatpush2.msra.mxu0 %v288
    %451 = vmatprep.subr.mxu0 %v285
    %452 = vmatpush2.msra.mxu0 %v284
    %453 = vmatprep.subr.mxu0 %v281
    %454 = vmatpush2.msra.mxu0 %v280
    %455 = vmatprep.subr.mxu0 %v277
    %456 = vmatpush2.msra.mxu0 %v276
    %457 = vmatprep.subr.mxu0 %v273
    %458 = vmatpush2.msra.mxu0 %v272
    %459 = vmatprep.subr.mxu0 %v269
    %460 = vmatpush2.msra.mxu0 %v268
    %461 = vmatprep.subr.mxu0 %v265
    %462 = vmatpush2.msra.mxu0 %v264
    %463 = vmatprep.subr.mxu0 %v261
    %464 = vmatpush2.msra.mxu0 %v260
    %465 = vmatprep.mubr.f32.mxu0 %v63
    %466 = vmatmul.mubr.f32.gmra.mxu0 %v62
    %v467 = vpop.f32.mrf.mxu0
    %v468 = vadd.f32 %v391, %v467
    %v469 = vpop.f32.mrf.mxu0
    %v470 = vadd.f32 %v393, %v469
    %471 = vmatprep.mubr.f32.mxu0 %v67
    %472 = vmatmul.mubr.f32.gmra.mxu0 %v66
    %v473 = vpop.f32.mrf.mxu0
    %v474 = vadd.f32 %v397, %v473
    %v475 = vpop.f32.mrf.mxu0
    %v476 = vadd.f32 %v399, %v475
    %477 = vdwg.mxu0
    %478 = vmatprep.subr.mxu0 %v131
    %479 = vmatpush1.msra.mxu0 %v130
    %480 = vmatprep.subr.mxu0 %v127
    %481 = vmatpush1.msra.mxu0 %v126
    %482 = vmatprep.subr.mxu0 %v123
    %483 = vmatpush1.msra.mxu0 %v122
    %484 = vmatprep.subr.mxu0 %v119
    %485 = vmatpush1.msra.mxu0 %v118
    %486 = vmatprep.subr.mxu0 %v115
    %487 = vmatpush1.msra.mxu0 %v114
    %488 = vmatprep.subr.mxu0 %v111
    %489 = vmatpush1.msra.mxu0 %v110
    %490 = vmatprep.subr.mxu0 %v107
    %491 = vmatpush1.msra.mxu0 %v106
    %492 = vmatprep.subr.mxu0 %v103
    %493 = vmatpush1.msra.mxu0 %v102
    %494 = vmatprep.subr.mxu0 %v99
    %495 = vmatpush1.msra.mxu0 %v98
    %496 = vmatprep.subr.mxu0 %v95
    %497 = vmatpush1.msra.mxu0 %v94
    %498 = vmatprep.subr.mxu0 %v91
    %499 = vmatpush1.msra.mxu0 %v90
    %500 = vmatprep.subr.mxu0 %v87
    %501 = vmatpush1.msra.mxu0 %v86
    %502 = vmatprep.subr.mxu0 %v83
    %503 = vmatpush1.msra.mxu0 %v82
    %504 = vmatprep.subr.mxu0 %v79
    %505 = vmatpush1.msra.mxu0 %v78
    %506 = vmatprep.subr.mxu0 %v75
    %507 = vmatpush1.msra.mxu0 %v74
    %508 = vmatprep.subr.mxu0 %v71
    %509 = vmatpush1.msra.mxu0 %v70
    %510 = vmatprep.subr.mxu0 %v195
    %511 = vmatpush2.msra.mxu0 %v194
    %512 = vmatprep.subr.mxu0 %v191
    %513 = vmatpush2.msra.mxu0 %v190
    %514 = vmatprep.subr.mxu0 %v187
    %515 = vmatpush2.msra.mxu0 %v186
    %516 = vmatprep.subr.mxu0 %v183
    %517 = vmatpush2.msra.mxu0 %v182
    %518 = vmatprep.subr.mxu0 %v179
    %519 = vmatpush2.msra.mxu0 %v178
    %520 = vmatprep.subr.mxu0 %v175
    %521 = vmatpush2.msra.mxu0 %v174
    %522 = vmatprep.subr.mxu0 %v171
    %523 = vmatpush2.msra.mxu0 %v170
    %524 = vmatprep.subr.mxu0 %v167
    %525 = vmatpush2.msra.mxu0 %v166
    %526 = vmatprep.subr.mxu0 %v163
    %527 = vmatpush2.msra.mxu0 %v162
    %528 = vmatprep.subr.mxu0 %v159
    %529 = vmatpush2.msra.mxu0 %v158
    %530 = vmatprep.subr.mxu0 %v155
    %531 = vmatpush2.msra.mxu0 %v154
    %532 = vmatprep.subr.mxu0 %v151
    %533 = vmatpush2.msra.mxu0 %v150
    %534 = vmatprep.subr.mxu0 %v147
    %535 = vmatpush2.msra.mxu0 %v146
    %536 = vmatprep.subr.mxu0 %v143
    %537 = vmatpush2.msra.mxu0 %v142
    %538 = vmatprep.subr.mxu0 %v139
    %539 = vmatpush2.msra.mxu0 %v138
    %540 = vmatprep.subr.mxu0 %v135
    %541 = vmatpush2.msra.mxu0 %v134
    %542 = vmatprep.mubr.f32.mxu0 %v61
    %543 = vmatmul.mubr.f32.gmra.mxu0 %v60
    %v544 = vpop.f32.mrf.mxu0
    %v545 = vadd.f32 0.0, %v544
    %v546 = vpop.f32.mrf.mxu0
    %v547 = vadd.f32 0.0, %v546
    %548 = vmatprep.mubr.f32.mxu0 %v65
    %549 = vmatmul.mubr.f32.gmra.mxu0 %v64
    %v550 = vpop.f32.mrf.mxu0
    %v551 = vadd.f32 0.0, %v550
    %v552 = vpop.f32.mrf.mxu0
    %v553 = vadd.f32 0.0, %v552
    %554 = vdwg.mxu0
    %555 = vmatprep.subr.mxu0 %v259
    %556 = vmatpush1.msra.mxu0 %v258
    %557 = vmatprep.subr.mxu0 %v255
    %558 = vmatpush1.msra.mxu0 %v254
    %559 = vmatprep.subr.mxu0 %v251
    %560 = vmatpush1.msra.mxu0 %v250
    %561 = vmatprep.subr.mxu0 %v247
    %562 = vmatpush1.msra.mxu0 %v246
    %563 = vmatprep.subr.mxu0 %v243
    %564 = vmatpush1.msra.mxu0 %v242
    %565 = vmatprep.subr.mxu0 %v239
    %566 = vmatpush1.msra.mxu0 %v238
    %567 = vmatprep.subr.mxu0 %v235
    %568 = vmatpush1.msra.mxu0 %v234
    %569 = vmatprep.subr.mxu0 %v231
    %570 = vmatpush1.msra.mxu0 %v230
    %571 = vmatprep.subr.mxu0 %v227
    %572 = vmatpush1.msra.mxu0 %v226
    %573 = vmatprep.subr.mxu0 %v223
    %574 = vmatpush1.msra.mxu0 %v222
    %575 = vmatprep.subr.mxu0 %v219
    %576 = vmatpush1.msra.mxu0 %v218
    %577 = vmatprep.subr.mxu0 %v215
    %578 = vmatpush1.msra.mxu0 %v214
    %579 = vmatprep.subr.mxu0 %v211
    %580 = vmatpush1.msra.mxu0 %v210
    %581 = vmatprep.subr.mxu0 %v207
    %582 = vmatpush1.msra.mxu0 %v206
    %583 = vmatprep.subr.mxu0 %v203
    %584 = vmatpush1.msra.mxu0 %v202
    %585 = vmatprep.subr.mxu0 %v199
    %586 = vmatpush1.msra.mxu0 %v198
    %587 = vmatprep.subr.mxu0 %v323
    %588 = vmatpush2.msra.mxu0 %v322
    %589 = vmatprep.subr.mxu0 %v319
    %590 = vmatpush2.msra.mxu0 %v318
    %591 = vmatprep.subr.mxu0 %v315
    %592 = vmatpush2.msra.mxu0 %v314
    %593 = vmatprep.subr.mxu0 %v311
    %594 = vmatpush2.msra.mxu0 %v310
    %595 = vmatprep.subr.mxu0 %v307
    %596 = vmatpush2.msra.mxu0 %v306
    %597 = vmatprep.subr.mxu0 %v303
    %598 = vmatpush2.msra.mxu0 %v302
    %599 = vmatprep.subr.mxu0 %v299
    %600 = vmatpush2.msra.mxu0 %v298
    %601 = vmatprep.subr.mxu0 %v295
    %602 = vmatpush2.msra.mxu0 %v294
    %603 = vmatprep.subr.mxu0 %v291
    %604 = vmatpush2.msra.mxu0 %v290
    %605 = vmatprep.subr.mxu0 %v287
    %606 = vmatpush2.msra.mxu0 %v286
    %607 = vmatprep.subr.mxu0 %v283
    %608 = vmatpush2.msra.mxu0 %v282
    %609 = vmatprep.subr.mxu0 %v279
    %610 = vmatpush2.msra.mxu0 %v278
    %611 = vmatprep.subr.mxu0 %v275
    %612 = vmatpush2.msra.mxu0 %v274
    %613 = vmatprep.subr.mxu0 %v271
    %614 = vmatpush2.msra.mxu0 %v270
    %615 = vmatprep.subr.mxu0 %v267
    %616 = vmatpush2.msra.mxu0 %v266
    %617 = vmatprep.subr.mxu0 %v263
    %618 = vmatpush2.msra.mxu0 %v262
    %619 = vmatprep.mubr.f32.mxu0 %v63
    %620 = vmatmul.mubr.f32.gmra.mxu0 %v62
    %v621 = vpop.f32.mrf.mxu0
    %v622 = vadd.f32 %v545, %v621
    %v623 = vpop.f32.mrf.mxu0
    %v624 = vadd.f32 %v547, %v623
    %625 = vmatprep.mubr.f32.mxu0 %v67
    %626 = vmatmul.mubr.f32.gmra.mxu0 %v66
    %v627 = vpop.f32.mrf.mxu0
    %v628 = vadd.f32 %v551, %v627
    %v629 = vpop.f32.mrf.mxu0
    %v630 = vadd.f32 %v553, %v629
    %631 = vdwg.mxu0
    %v632 = vadd.f32 %v52, %v468
    %v633 = vadd.f32 %v53, %v470
    %v634 = vadd.f32 %v54, %v622
    %v635 = vadd.f32 %v55, %v624
    %v636 = vadd.f32 %v56, %v474
    %v637 = vadd.f32 %v57, %v476
    %v638 = vadd.f32 %v58, %v628
    %v639 = vadd.f32 %v59, %v630
    %640 = vst [vmem:[#allocation2] sm:$0xff] %v632
    %641 = vst [vmem:[#allocation2 + $0x8] sm:$0xff] %v633
    %642 = vst [vmem:[#allocation2 + $0x10] sm:$0xff] %v634
    %643 = vst [vmem:[#allocation2 + $0x18] sm:$0xff] %v635
    %644 = vst [vmem:[#allocation2 + $0x20] sm:$0xff] %v636
    %645 = vst [vmem:[#allocation2 + $0x28] sm:$0xff] %v637
    %646 = vst [vmem:[#allocation2 + $0x30] sm:$0xff] %v638
    %647 = vst [vmem:[#allocation2 + $0x38] sm:$0xff] %v639
    // Predicated region
    $region22: #{tpu_custom_call.1} parent=1 // pred_check
      %p648 = pneg %p40
    $region23: #{tpu_custom_call.1} parent=1 // pred_check_branch
      %650 = sbr.rel (%p648) target = $region25
    $region24: #{tpu_custom_call.1} parent=1 // pred_region
      %v651 = vld [vmem:[#allocation2] sm:$0xff]
      %v652 = vld [vmem:[#allocation2 + $0x8] sm:$0xff]
      %v653 = vld [vmem:[#allocation2 + $0x10] sm:$0xff]
      %v654 = vld [vmem:[#allocation2 + $0x18] sm:$0xff]
      %v655 = vld [vmem:[#allocation2 + $0x20] sm:$0xff]
      %v656 = vld [vmem:[#allocation2 + $0x28] sm:$0xff]
      %v657 = vld [vmem:[#allocation2 + $0x30] sm:$0xff]
      %v658 = vld [vmem:[#allocation2 + $0x38] sm:$0xff]
      %659 = vst [vmem:[#allocation8] sm:$0xff] %v651
      %660 = vst [vmem:[#allocation8 + $0x8] sm:$0xff] %v655
      %s661 = scalar_lea.vmem [#allocation8], 16
      %662 = vst [vmem:[%s661] sm:$0xff] %v652
      %663 = vst [vmem:[%s661 + $0x8] sm:$0xff] %v656
      %s664 = scalar_lea.vmem [#allocation8], 32
      %665 = vst [vmem:[%s664] sm:$0xff] %v653
      %666 = vst [vmem:[%s664 + $0x8] sm:$0xff] %v657
      %s667 = scalar_lea.vmem [#allocation8], 48
      %668 = vst [vmem:[%s667] sm:$0xff] %v654
      %669 = vst [vmem:[%s667 + $0x8] sm:$0xff] %v658
    $region25: #{tpu_custom_call.1} parent=1 // pred_fallthru
      _
    // Predicated region
    $region26: #{tpu_custom_call.1} parent=1 // pred_check
      _
    $region27: #{tpu_custom_call.1} parent=1 // pred_check_branch
      %671 = sbr.rel (0) target = $region29
    $region28: #{tpu_custom_call.1} parent=1 // pred_region
      %s673 = ssub.s32 1024, 1024
      %674 = vsyncadd [#allocation5], %s673
      %s675 = sshll.u32 [#allocation8], 4
      %s676 = int_to_ptr.vmem [resolvable:$true] %s675
      %681 = dma.vmem_to_hbm [thread:$0]  %s676, 1024, %s2, [#allocation5], 128, 128, 8
    $region29: #{tpu_custom_call.1} parent=1 // pred_fallthru
      _
    // Predicated region
    $region30: #{tpu_custom_call.1} parent=1 // pred_check
      _
    $region31: #{tpu_custom_call.1} parent=1 // pred_check_branch
      %683 = sbr.rel (0) target = $region33
    $region32: #{tpu_custom_call.1} parent=1 // pred_region
      %684 = dma.done [#allocation5], 1024
    $region33: #{tpu_custom_call.1} parent=1 // pred_fallthru
      _
    %685 = vsyncpa [#allocation4], 1
    %686 = vsyncpa [#allocation7], 1
    %687 = vsyncpa [#allocation5], 1

</llo_original>
